<compile_context>
chip_gen: v7x
topology: tpu7x:2x2x1
jax: 0.10.0
libtpu: 0.0.40
codegen_flags: <defaults>
</compile_context>

<pallas_src>
import math

import jax
import jax.numpy as jnp
from jax.experimental import pallas as pl
from jax.experimental.pallas import tpu as pltpu

EPS = 1e-12                       # torch F.normalize default eps
VMEM_WORKSET_BUDGET = 24 << 20    # double-buffered tile working set (v7x-safe)
VMEM_LIMIT_BYTES = 32 << 20


def _pick_batch_tile(batch, row_bytes):
    """Largest batch tile that (a) divides batch, (b) satisfies the (8,128)
    sublane rule (multiple of 8, or equal to the full batch), and (c) keeps the
    double-buffered working set under VMEM_WORKSET_BUDGET."""
    max_rows = max(1, VMEM_WORKSET_BUDGET // (2 * max(int(row_bytes), 1)))
    cands = sorted({d for d in range(8, batch + 1, 8) if batch % d == 0} | {batch})
    fitting = [d for d in cands if d <= max_rows]
    return fitting[-1] if fitting else cands[0]


def _compiler_params():
    return pltpu.CompilerParams(
        dimension_semantics=("parallel",),     # batch tiles are independent
        vmem_limit_bytes=VMEM_LIMIT_BYTES,
    )


# --------------------------------------------------------------------------
# Kernel 1: relation scoring (train_base_pre_relation hot path)
#   ht_emb : [B, D]   (index_select'ed hyper node embeddings)
#   rel_emb: [B, R, D]
#   gt     : [B, R]   (+1 / -1 labels)
# Produces score [B, R] and per-tile partial sums of softplus(-score*gt);
# the mean is finished in the wrapper.
# --------------------------------------------------------------------------
def relation_score_kernel(ht_ref, rel_ref, gt_ref, score_ref, loss_ref):
    ht = ht_ref[...].astype(jnp.float32)       # [Bt, D]
    rel = rel_ref[...].astype(jnp.float32)     # [Bt, R, D]
    gt = gt_ref[...].astype(jnp.float32)       # [Bt, R]

    # F.normalize(p=2, dim=-1): x / max(||x||, eps) == x * rsqrt(max(sumsq, eps^2))
    ht_n = ht * jax.lax.rsqrt(
        jnp.maximum(jnp.sum(ht * ht, axis=-1, keepdims=True), EPS * EPS))
    rel_n = rel * jax.lax.rsqrt(
        jnp.maximum(jnp.sum(rel * rel, axis=-1, keepdims=True), EPS * EPS))

    # score = (rel_emb @ ht.unsqueeze(2)).squeeze(2) -> [Bt, R]
    # TODO(synk): at production D/R this batched mat-vec could be routed through
    # the MXU via a batched dot_general; broadcast-multiply + lane reduce is
    # neutral at these shapes and always lowers.
    score = jnp.sum(rel_n * ht_n[:, None, :], axis=-1)
    score_ref[...] = score

    # softplus(-score * gt) with gt in {+1,-1}: gt>0 -> softplus(-score)
    z = jnp.where(gt > 0, -score, score)
    partial = jnp.sum(jnp.logaddexp(jnp.float32(0.0), z), axis=(0, 1), keepdims=True)
    loss_ref[...] = partial.reshape(1, 1, 1)


def relation_score(ht_emb, rel_emb, ground_truth):
    B, R, D = rel_emb.shape
    row_bytes = (D + R * D + 2 * R) * 4
    Bt = _pick_batch_tile(B, row_bytes)
    G = B // Bt

    grid_spec = pltpu.PrefetchScalarGridSpec(
        num_scalar_prefetch=0,
        grid=(G,),
        in_specs=[
            pl.BlockSpec((Bt, D), lambda i: (i, 0)),
            pl.BlockSpec((Bt, R, D), lambda i: (i, 0, 0)),
            pl.BlockSpec((Bt, R), lambda i: (i, 0)),
        ],
        out_specs=(
            pl.BlockSpec((Bt, R), lambda i: (i, 0)),
            pl.BlockSpec((1, 1, 1), lambda i: (i, 0, 0)),
        ),
    )
    cost = pl.CostEstimate(
        flops=int(6 * B * R * D + 4 * B * D),
        transcendentals=int(B * (1 + R) + 2 * B * R),
        bytes_accessed=int(4 * (B * D + B * R * D + 2 * B * R + G)),
    )
    score, loss_parts = pl.pallas_call(
        relation_score_kernel,
        out_shape=(jax.ShapeDtypeStruct((B, R), jnp.float32),
                   jax.ShapeDtypeStruct((G, 1, 1), jnp.float32)),
        grid_spec=grid_spec,
        compiler_params=_compiler_params(),
        cost_estimate=cost,
    )(ht_emb, rel_emb, ground_truth)

    loss = jnp.sum(loss_parts) / jnp.float32(B * R)   # finish mean in plain JAX
    return score, loss


# --------------------------------------------------------------------------
# Kernel 2 (fused): ce_predictor (Linear(D,1)+Sigmoid) + train_step scoring
#   pos: [B, D] (hyper_edge_emb), neg: [B, N, D], rel: [B, D]
#   w_t: [D, 1] (pre-transposed Linear weight), b: [1, 1]
#   p_score = ||pos * rel||_2 over D -> [B, 1]
#   n_score = ||neg * rel||_2 over D -> [B, N]
#   MRL loss returned as per-tile partial hinge sums, mean finished outside.
# --------------------------------------------------------------------------
def make_predict_mrl_kernel(gamma):
    gamma = float(gamma)

    def kernel(pos_ref, neg_ref, rel_ref, w_ref, b_ref,
               prob_ref, p_ref, n_ref, loss_ref):
        pos = pos_ref[...].astype(jnp.float32)   # [Bt, D]
        neg = neg_ref[...].astype(jnp.float32)   # [Bt, N, D]
        rel = rel_ref[...].astype(jnp.float32)   # [Bt, D]
        w = w_ref[...].astype(jnp.float32)       # [D, 1]
        b = b_ref[...].astype(jnp.float32)       # [1, 1]

        # ce_predictor: Sigmoid(Linear(D, 1)) -- MXU matmul.
        logits = jnp.dot(pos, w, preferred_element_type=jnp.float32) + b  # [Bt, 1]
        prob_ref[...] = jax.nn.sigmoid(logits)

        # p_score / n_score = L2 norm of (emb * rel) over the embedding dim.
        pr = pos * rel
        p = jnp.sqrt(jnp.sum(pr * pr, axis=-1, keepdims=True))   # [Bt, 1]
        nr = neg * rel[:, None, :]
        n = jnp.sqrt(jnp.sum(nr * nr, axis=-1))                  # [Bt, N]
        p_ref[...] = p
        n_ref[...] = n

        # TODO(synk): MRL class is not given in the source; assume standard
        # margin-ranking loss mean(relu(gamma + n_score - p_score)).
        hinge = jnp.maximum(jnp.float32(gamma) + n - p, jnp.float32(0.0))
        loss_ref[...] = jnp.sum(hinge, axis=(0, 1), keepdims=True).reshape(1, 1, 1)

    return kernel


def ce_predict_and_mrl(hyper_edge_emb, neg_hyper_edge_emb, relation_emb,
                       w_ce, b_ce, gamma):
    B, N, D = neg_hyper_edge_emb.shape
    w_t = jnp.asarray(w_ce, jnp.float32).reshape(1, D).T       # [D, 1]
    b = jnp.asarray(b_ce, jnp.float32).reshape(1, 1)

    row_bytes = (2 * D + N * D + 3 + N) * 4
    Bt = _pick_batch_tile(B, row_bytes)
    G = B // Bt

    grid_spec = pltpu.PrefetchScalarGridSpec(
        num_scalar_prefetch=0,
        grid=(G,),
        in_specs=[
            pl.BlockSpec((Bt, D), lambda i: (i, 0)),        # pos
            pl.BlockSpec((Bt, N, D), lambda i: (i, 0, 0)),  # neg
            pl.BlockSpec((Bt, D), lambda i: (i, 0)),        # rel
            pl.BlockSpec((D, 1), lambda i: (0, 0)),         # W^T (VMEM-resident)
            pl.BlockSpec((1, 1), lambda i: (0, 0)),         # bias (VMEM-resident)
        ],
        out_specs=(
            pl.BlockSpec((Bt, 1), lambda i: (i, 0)),        # probs
            pl.BlockSpec((Bt, 1), lambda i: (i, 0)),        # p_score
            pl.BlockSpec((Bt, N), lambda i: (i, 0)),        # n_score
            pl.BlockSpec((1, 1, 1), lambda i: (i, 0, 0)),   # per-tile loss sum
        ),
    )
    cost = pl.CostEstimate(
        flops=int(5 * B * D + 3 * B * N * D + 3 * B * N),
        transcendentals=int(3 * B + B * N),
        bytes_accessed=int(4 * (2 * B * D + B * N * D + D + 1
                                + 2 * B + B * N + G)),
    )
    probs, p_score, n_score, loss_parts = pl.pallas_call(
        make_predict_mrl_kernel(gamma),
        out_shape=(jax.ShapeDtypeStruct((B, 1), jnp.float32),
                   jax.ShapeDtypeStruct((B, 1), jnp.float32),
                   jax.ShapeDtypeStruct((B, N), jnp.float32),
                   jax.ShapeDtypeStruct((G, 1, 1), jnp.float32)),
        grid_spec=grid_spec,
        compiler_params=_compiler_params(),
        cost_estimate=cost,
    )(hyper_edge_emb, neg_hyper_edge_emb, relation_emb, w_t, b)

    mrl_loss = jnp.sum(loss_parts) / jnp.float32(B * N)
    return probs, p_score, n_score, mrl_loss


if __name__ == "__main__":
    key = jax.random.PRNGKey(0)
    ks = jax.random.split(key, 10)

    # small, module-consistent shapes
    n_node, n_hyper_edge = 16, 8
    B, D, R, N, n_rel = 8, 128, 4, 4, 6
    gamma = 0.2                          # hyperkgeConfig.gamma
    stdv = 1.0 / math.sqrt(D)            # init_parameters: uniform(-stdv, stdv)

    # deterministic "parameter" tables
    hyper_node_embeddings = jax.random.uniform(ks[0], (n_hyper_edge, D), jnp.float32, -stdv, stdv)
    rel_table = jax.random.uniform(ks[1], (n_rel, R * D), jnp.float32, -stdv, stdv)
    w_ce = jax.random.uniform(ks[2], (1, D), jnp.float32, -stdv, stdv)   # Linear(D,1) weight
    b_ce = jax.random.uniform(ks[3], (1, 1), jnp.float32, -stdv, stdv)   # Linear(D,1) bias

    # deterministic inputs
    base = jax.random.randint(ks[4], (B,), 0, n_rel)
    base_edge_index = jax.random.randint(ks[5], (B, 1), n_node, n_node + n_hyper_edge)
    ground_truth = jnp.where(jax.random.bernoulli(ks[6], 0.5, (B, R)), 1.0, -1.0).astype(jnp.float32)

    # TODO(synk): HyperKGE encoder is not provided; its outputs are substituted
    # with deterministic inputs of the correct shapes.
    hyper_edge_emb = jax.random.uniform(ks[7], (B, D), jnp.float32, -stdv, stdv)
    neg_hyper_edge_emb = jax.random.uniform(ks[8], (B, N, D), jnp.float32, -stdv, stdv)
    relation_emb = jax.random.uniform(ks[9], (B, D), jnp.float32, -stdv, stdv)

    # Glue: index_select / embedding lookup / reshape stay in plain JAX.
    # TODO(synk): an in-kernel scalar-prefetch row gather would remove this
    # extra HBM round trip but forces per-row tiles; kept in plain JAX.
    idx = jnp.squeeze(base_edge_index, axis=-1) - n_node
    ht_emb = jnp.take(hyper_node_embeddings, idx, axis=0)            # [B, D]
    rel_emb = jnp.take(rel_table, base, axis=0).reshape(B, R, D)     # [B, R, D]

    # kernels
    score, base_loss = relation_score(ht_emb, rel_emb, ground_truth)
    probs, p_score, n_score, mrl_loss = ce_predict_and_mrl(
        hyper_edge_emb, neg_hyper_edge_emb, relation_emb, w_ce, b_ce, gamma)

    jax.block_until_ready((score, base_loss, probs, p_score, n_score, mrl_loss))
    print("KERNEL_OK")
</pallas_src>

<mosaic_0001>
module attributes {stable_mosaic.version = 11 : i64} {
  func.func @relation_score_kernel(%arg0: i32, %arg1: memref<8x128xf32, #tpu.memory_space<vmem>>, %arg2: memref<8x4x128xf32, #tpu.memory_space<vmem>>, %arg3: memref<8x4xf32, #tpu.memory_space<vmem>>, %arg4: memref<8x4xf32, #tpu.memory_space<vmem>>, %arg5: memref<1x1x1xf32, #tpu.memory_space<vmem>>) attributes {dimension_semantics = [#tpu.dimension_semantics<parallel>], iteration_bounds = array<i64: 1>, scalar_prefetch = 0 : i64, scratch_operands = 0 : i64, tpu.core_type = #tpu.core_type<tc>, window_params = [{transform_indices = @transform_0, window_bounds = array<i64: 8, 128>}, {transform_indices = @transform_1, window_bounds = array<i64: 8, 4, 128>}, {transform_indices = @transform_2, window_bounds = array<i64: 8, 4>}, {transform_indices = @transform_3, window_bounds = array<i64: 8, 4>}, {transform_indices = @transform_4, window_bounds = array<i64: 1, 1, 1>}]} {
    %c0 = arith.constant 0 : index
    %c0_0 = arith.constant 0 : index
    %0 = vector.load %arg1[%c0, %c0_0] : memref<8x128xf32, #tpu.memory_space<vmem>>, vector<8x128xf32>
    %c0_1 = arith.constant 0 : index
    %c0_2 = arith.constant 0 : index
    %c0_3 = arith.constant 0 : index
    %1 = vector.load %arg2[%c0_1, %c0_2, %c0_3] : memref<8x4x128xf32, #tpu.memory_space<vmem>>, vector<8x4x128xf32>
    %c0_4 = arith.constant 0 : index
    %c0_5 = arith.constant 0 : index
    %2 = vector.load %arg3[%c0_4, %c0_5] : memref<8x4xf32, #tpu.memory_space<vmem>>, vector<8x4xf32>
    %3 = arith.mulf %0, %0 : vector<8x128xf32>
    %cst = arith.constant dense<0.000000e+00> : vector<8xf32>
    %4 = vector.multi_reduction <add>, %3, %cst [1] : vector<8x128xf32> to vector<8xf32>
    %5 = vector.shape_cast %4 : vector<8xf32> to vector<8x1xf32>
    %cst_6 = arith.constant 1.000000e-24 : f32
    %6 = vector.broadcast %cst_6 : f32 to vector<8x1xf32>
    %7 = arith.maximumf %5, %6 : vector<8x1xf32>
    %8 = math.rsqrt %7 : vector<8x1xf32>
    %9 = vector.broadcast %8 : vector<8x1xf32> to vector<8x128xf32>
    %10 = arith.mulf %0, %9 : vector<8x128xf32>
    %11 = arith.mulf %1, %1 : vector<8x4x128xf32>
    %cst_7 = arith.constant dense<0.000000e+00> : vector<8x4xf32>
    %12 = vector.multi_reduction <add>, %11, %cst_7 [2] : vector<8x4x128xf32> to vector<8x4xf32>
    %13 = vector.shape_cast %12 : vector<8x4xf32> to vector<8x4x1xf32>
    %cst_8 = arith.constant 1.000000e-24 : f32
    %14 = vector.broadcast %cst_8 : f32 to vector<8x4x1xf32>
    %15 = arith.maximumf %13, %14 : vector<8x4x1xf32>
    %16 = math.rsqrt %15 : vector<8x4x1xf32>
    %17 = vector.broadcast %16 : vector<8x4x1xf32> to vector<8x4x128xf32>
    %18 = arith.mulf %1, %17 : vector<8x4x128xf32>
    %19 = vector.shape_cast %10 : vector<8x128xf32> to vector<8x1x128xf32>
    %20 = vector.broadcast %19 : vector<8x1x128xf32> to vector<8x4x128xf32>
    %21 = arith.mulf %18, %20 : vector<8x4x128xf32>
    %cst_9 = arith.constant dense<0.000000e+00> : vector<8x4xf32>
    %22 = vector.multi_reduction <add>, %21, %cst_9 [2] : vector<8x4x128xf32> to vector<8x4xf32>
    %c0_10 = arith.constant 0 : index
    %c0_11 = arith.constant 0 : index
    %23 = vector.load %arg4[%c0_10, %c0_11] : memref<8x4xf32, #tpu.memory_space<vmem>>, vector<8x4xf32>
    tpu.vector_store %arg4[%c0_10, %c0_11], %22 {strides = array<i32>} : memref<8x4xf32, #tpu.memory_space<vmem>>, vector<8x4xf32>,
    %cst_12 = arith.constant 0.000000e+00 : f32
    %24 = vector.broadcast %cst_12 : f32 to vector<8x4xf32>
    %25 = arith.cmpf ogt, %2, %24 : vector<8x4xf32>
    %cst_13 = arith.constant 0.000000e+00 : f32
    %26 = vector.broadcast %cst_13 : f32 to vector<8x4xf32>
    %27 = arith.subf %26, %22 : vector<8x4xf32>
    %28 = arith.select %25, %27, %22 : vector<8x4xi1>, vector<8x4xf32>
    %cst_14 = arith.constant 0.000000e+00 : f32
    %29 = vector.broadcast %cst_14 : f32 to vector<8x4xf32>
    %30 = arith.maximumf %29, %28 : vector<8x4xf32>
    %31 = vector.broadcast %cst_14 : f32 to vector<8x4xf32>
    %32 = arith.subf %31, %28 : vector<8x4xf32>
    %33 = arith.cmpf one, %32, %32 : vector<8x4xf32>
    %34 = vector.broadcast %cst_14 : f32 to vector<8x4xf32>
    %35 = arith.addf %34, %28 : vector<8x4xf32>
    %36 = math.absf %32 : vector<8x4xf32>
    %cst_15 = arith.constant 0.000000e+00 : f32
    %37 = vector.broadcast %cst_15 : f32 to vector<8x4xf32>
    %38 = arith.subf %37, %36 : vector<8x4xf32>
    %39 = math.exp %38 : vector<8x4xf32>
    %40 = math.log1p %39 : vector<8x4xf32>
    %41 = arith.addf %30, %40 : vector<8x4xf32>
    %42 = arith.select %33, %35, %41 : vector<8x4xi1>, vector<8x4xf32>
    %43 = vector.shape_cast %42 : vector<8x4xf32> to vector<1x8x4xf32>
    %cst_16 = arith.constant dense<0.000000e+00> : vector<1xf32>
    %44 = vector.multi_reduction <add>, %43, %cst_16 [1, 2] : vector<1x8x4xf32> to vector<1xf32>
    %45 = vector.shape_cast %44 : vector<1xf32> to vector<1x1x1xf32>
    %46 = vector.extract %45[0, 0, 0] : f32 from vector<1x1x1xf32>
    %47 = vector.broadcast %46 : f32 to vector<1x1xf32>
    %48 = vector.shape_cast %47 : vector<1x1xf32> to vector<1x1x1xf32>
    %c0_17 = arith.constant 0 : index
    %c0_18 = arith.constant 0 : index
    %c0_19 = arith.constant 0 : index
    %49 = vector.load %arg5[%c0_17, %c0_18, %c0_19] : memref<1x1x1xf32, #tpu.memory_space<vmem>>, vector<1x1x1xf32>
    tpu.vector_store %arg5[%c0_17, %c0_18, %c0_19], %48 {strides = array<i32>} : memref<1x1x1xf32, #tpu.memory_space<vmem>>, vector<1x1x1xf32>,
    return
  }
  func.func @transform_0(%arg0: i32) -> (i32, i32) {
    %c0_i32 = arith.constant 0 : i32
    %c0_i32_0 = arith.constant 0 : i32
    return %arg0, %c0_i32 : i32, i32
  }
  func.func @transform_1(%arg0: i32) -> (i32, i32, i32) {
    %c0_i32 = arith.constant 0 : i32
    %c0_i32_0 = arith.constant 0 : i32
    %c0_i32_1 = arith.constant 0 : i32
    return %arg0, %c0_i32, %c0_i32_0 : i32, i32, i32
  }
  func.func @transform_2(%arg0: i32) -> (i32, i32) {
    %c0_i32 = arith.constant 0 : i32
    %c0_i32_0 = arith.constant 0 : i32
    return %arg0, %c0_i32 : i32, i32
  }
  func.func @transform_3(%arg0: i32) -> (i32, i32) {
    %c0_i32 = arith.constant 0 : i32
    %c0_i32_0 = arith.constant 0 : i32
    return %arg0, %c0_i32 : i32, i32
  }
  func.func @transform_4(%arg0: i32) -> (i32, i32, i32) {
    %c0_i32 = arith.constant 0 : i32
    %c0_i32_0 = arith.constant 0 : i32
    %c0_i32_1 = arith.constant 0 : i32
    return %arg0, %c0_i32, %c0_i32_0 : i32, i32, i32
  }
}

</mosaic_0001>

<llo_original>
// kernel: tpu_custom_call.1
$region0: #{tpu_custom_call.1}
  #allocation0 [shape = 'u32[]', space=smem, size = 0x4, offset = 0x4, fixed_abs, tag = 'smem constant byte address 0x4 - core index']
  #allocation1 [shape = 'u32[144,128]{1,0:T(1,128)}', space=vmem, size = 0x12000, scoped, tag = 'internal scratch']
  %s0 = inlined_call_operand.vmem [shape: f32[8,128], index: 0, kind: input, shape index: {}]
  %s1 = inlined_call_operand.hbm [shape: f32[8,4,128], index: 1, kind: input, shape index: {}]
  %s2 = inlined_call_operand.vmem [shape: f32[8,4], index: 2, kind: input, shape index: {}]
  %s3 = inlined_call_operand.vmem [shape: f32[8,4], index: 3, kind: output, shape index: {0}]
  %s4 = inlined_call_operand.hbm [shape: f32[1,1,1], index: 4, kind: output, shape index: {1}]
  %5 = xla_tuple %s3, %s4
  %s6 = sld [smem:[#allocation0]]
  $region34: #{tpu_custom_call.1} parent=0
    _
  %s8 = ssub.s32 1, %s6
  %s9 = scalar_select 0, %s8, %s6
  $region1: #{tpu_custom_call.1} parent=0
    #allocation2 [shape = 'u8[16384]{0}', space=vmem, size = 0x4000, scoped, tag = 'input window, operand 1, single buffered']
    #allocation3 [shape = 's32[1]{0}', space=sflag, size = 0x4, scoped, tag = 'scoped memory for tpu_custom_call.1']
    #allocation4 [shape = 's32[1]{0}', space=sflag, size = 0x4, scoped, tag = 'scoped memory for tpu_custom_call.1']
    #allocation5 [shape = 'u8[512]{0}', space=vmem, size = 0x400, scoped, tag = 'output window, operand 1, single buffered']
    %10 = vsyncpa [#allocation3], 0
    %11 = vsyncpa [#allocation4], 0
    // Predicated region
    $region2: #{tpu_custom_call.1} parent=1 // pred_check
      _
    $region3: #{tpu_custom_call.1} parent=1 // pred_check_branch
      %13 = sbr.rel (0) target = $region5
    $region4: #{tpu_custom_call.1} parent=1 // pred_region
      _
    $region5: #{tpu_custom_call.1} parent=1 // pred_fallthru
      _
    // Predicated region
    $region6: #{tpu_custom_call.1} parent=1 // pred_check
      _
    $region7: #{tpu_custom_call.1} parent=1 // pred_check_branch
      %15 = sbr.rel (0) target = $region9
    $region8: #{tpu_custom_call.1} parent=1 // pred_region
      %s17 = ssub.s32 512, 512
      %18 = vsyncadd [#allocation3], %s17
      %s19 = sshll.u32 [#allocation2], 4
      %s20 = int_to_ptr.vmem [resolvable:$true] %s19
      %25 = dma.hbm_to_vmem [thread:$0]  %s1, 512, %s20, [#allocation3], 64, 64, 4
    $region9: #{tpu_custom_call.1} parent=1 // pred_fallthru
      _
    // Predicated region
    $region10: #{tpu_custom_call.1} parent=1 // pred_check
      _
    $region11: #{tpu_custom_call.1} parent=1 // pred_check_branch
      %27 = sbr.rel (0) target = $region13
    $region12: #{tpu_custom_call.1} parent=1 // pred_region
      _
    $region13: #{tpu_custom_call.1} parent=1 // pred_fallthru
      _
    // Predicated region
    $region14: #{tpu_custom_call.1} parent=1 // pred_check
      _
    $region15: #{tpu_custom_call.1} parent=1 // pred_check_branch
      %29 = sbr.rel (0) target = $region17
    $region16: #{tpu_custom_call.1} parent=1 // pred_region
      %30 = dma.done [#allocation3], 512
    $region17: #{tpu_custom_call.1} parent=1 // pred_fallthru
      _
    %v31 = vld [vmem:[%s0] sm:$0xff]
    %v32 = vld [vmem:[#allocation2] sm:$0xf]
    %v33 = vld [vmem:[#allocation2 + $0x4] sm:$0xf]
    %v34 = vld [vmem:[#allocation2 + $0x8] sm:$0xf]
    %v35 = vld [vmem:[#allocation2 + $0xc] sm:$0xf]
    %v36 = vld [vmem:[#allocation2 + $0x10] sm:$0xf]
    %v37 = vld [vmem:[#allocation2 + $0x14] sm:$0xf]
    %v38 = vld [vmem:[#allocation2 + $0x18] sm:$0xf]
    %v39 = vld [vmem:[#allocation2 + $0x1c] sm:$0xf]
    %v40 = vld [vmem:[%s2] sm:$0xff]
    %v41 = vmul.f32 %v31, %v31
    %42 = vadd.xlane.f32.xlu0 %v41
    %v43 = vpop.xlane.xlu0 %42
    %v44 = vmax.f32 %v43, 1e-24
    %v45 = vrsqrt.pop %v44
    %v46 = vmul.f32 %v31, %v45
    %v47 = vmul.f32 %v32, %v32
    %v48 = vmul.f32 %v33, %v33
    %v49 = vmul.f32 %v34, %v34
    %v50 = vmul.f32 %v35, %v35
    %v51 = vmul.f32 %v36, %v36
    %v52 = vmul.f32 %v37, %v37
    %v53 = vmul.f32 %v38, %v38
    %v54 = vmul.f32 %v39, %v39
    %vm55 = vcmask 1043456
    %v56 = vsel %vm55, %v47, 0.0
    %57 = vadd.xlane.f32.xlu0 %v56
    %v58 = vpop.xlane.xlu0 %57
    %v59 = vsel %vm55, %v48, 0.0
    %60 = vadd.xlane.f32.xlu0 %v59
    %v61 = vpop.xlane.xlu0 %60
    %v62 = vsel %vm55, %v49, 0.0
    %63 = vadd.xlane.f32.xlu0 %v62
    %v64 = vpop.xlane.xlu0 %63
    %v65 = vsel %vm55, %v50, 0.0
    %66 = vadd.xlane.f32.xlu0 %v65
    %v67 = vpop.xlane.xlu0 %66
    %v68 = vsel %vm55, %v51, 0.0
    %69 = vadd.xlane.f32.xlu0 %v68
    %v70 = vpop.xlane.xlu0 %69
    %v71 = vsel %vm55, %v52, 0.0
    %72 = vadd.xlane.f32.xlu0 %v71
    %v73 = vpop.xlane.xlu0 %72
    %v74 = vsel %vm55, %v53, 0.0
    %75 = vadd.xlane.f32.xlu0 %v74
    %v76 = vpop.xlane.xlu0 %75
    %v77 = vsel %vm55, %v54, 0.0
    %78 = vadd.xlane.f32.xlu0 %v77
    %v79 = vpop.xlane.xlu0 %78
    %v80 = vmax.f32 %v58, 1e-24
    %v81 = vmax.f32 %v61, 1e-24
    %v82 = vmax.f32 %v64, 1e-24
    %v83 = vmax.f32 %v67, 1e-24
    %v84 = vmax.f32 %v70, 1e-24
    %v85 = vmax.f32 %v73, 1e-24
    %v86 = vmax.f32 %v76, 1e-24
    %v87 = vmax.f32 %v79, 1e-24
    %v88 = vrsqrt.pop %v80
    %v89 = vrsqrt.pop %v81
    %v90 = vrsqrt.pop %v82
    %v91 = vrsqrt.pop %v83
    %v92 = vrsqrt.pop %v84
    %v93 = vrsqrt.pop %v85
    %v94 = vrsqrt.pop %v86
    %v95 = vrsqrt.pop %v87
    %v96 = vmul.f32 %v32, %v88
    %v97 = vmul.f32 %v33, %v89
    %v98 = vmul.f32 %v34, %v90
    %v99 = vmul.f32 %v35, %v91
    %v100 = vmul.f32 %v36, %v92
    %v101 = vmul.f32 %v37, %v93
    %v102 = vmul.f32 %v38, %v94
    %v103 = vmul.f32 %v39, %v95
    %v105 = vcombine.high %v46, %v46
    %v107 = vunpack.c.l.s4 1966171168
    %v108 = vunpack.c.0.s8 %v107
    %v109 = vlaneseq
    %v110 = vshrl.u32 %v109, 7
    %v111 = vsub.s32 %v108, %v110
    %v112 = vrot.slane %v46, %v111
    %v114 = vunpack.c.l.s4 1966171168
    %v115 = vunpack.c.0.s8 %v114
    %v116 = vlaneseq
    %v117 = vshrl.u32 %v116, 7
    %v118 = vsub.s32 %v115, %v117
    %v119 = vrot.slane %v105, %v118
    %v120 = vcombine.high %v112, %v112
    %v121 = vcombine.high %v119, %v119
    %v123 = vunpack.c.l.s4 1966171168
    %v124 = vunpack.c.0.s8 %v123
    %v125 = vlaneseq
    %v126 = vshrl.u32 %v125, 7
    %v127 = vsub.s32 %v124, %v126
    %v128 = vrot.slane %v112, %v127
    %v130 = vunpack.c.l.s4 1966171168
    %v131 = vunpack.c.0.s8 %v130
    %v132 = vlaneseq
    %v133 = vshrl.u32 %v132, 7
    %v134 = vsub.s32 %v131, %v133
    %v135 = vrot.slane %v119, %v134
    %v137 = vunpack.c.l.s4 1966171168
    %v138 = vunpack.c.0.s8 %v137
    %v139 = vlaneseq
    %v140 = vshrl.u32 %v139, 7
    %v141 = vsub.s32 %v138, %v140
    %v142 = vrot.slane %v120, %v141
    %v144 = vunpack.c.l.s4 1966171168
    %v145 = vunpack.c.0.s8 %v144
    %v146 = vlaneseq
    %v147 = vshrl.u32 %v146, 7
    %v148 = vsub.s32 %v145, %v147
    %v149 = vrot.slane %v121, %v148
    %v150 = vcombine.high %v128, %v128
    %v151 = vcombine.high %v135, %v135
    %v152 = vcombine.high %v142, %v142
    %v153 = vcombine.high %v149, %v149
    %v154 = vlaneseq
    %v155 = vshrl.u32 %v154, 7
    %v156 = vsub.s32 0, %v155
    %v157 = vrot.slane %v128, %v156
    %v158 = vlaneseq
    %v159 = vshrl.u32 %v158, 7
    %v160 = vsub.s32 0, %v159
    %v161 = vrot.slane %v142, %v160
    %v162 = vlaneseq
    %v163 = vshrl.u32 %v162, 7
    %v164 = vsub.s32 0, %v163
    %v165 = vrot.slane %v150, %v164
    %v166 = vlaneseq
    %v167 = vshrl.u32 %v166, 7
    %v168 = vsub.s32 0, %v167
    %v169 = vrot.slane %v152, %v168
    %v170 = vlaneseq
    %v171 = vshrl.u32 %v170, 7
    %v172 = vsub.s32 0, %v171
    %v173 = vrot.slane %v135, %v172
    %v174 = vlaneseq
    %v175 = vshrl.u32 %v174, 7
    %v176 = vsub.s32 0, %v175
    %v177 = vrot.slane %v149, %v176
    %v178 = vlaneseq
    %v179 = vshrl.u32 %v178, 7
    %v180 = vsub.s32 0, %v179
    %v181 = vrot.slane %v151, %v180
    %v182 = vlaneseq
    %v183 = vshrl.u32 %v182, 7
    %v184 = vsub.s32 0, %v183
    %v185 = vrot.slane %v153, %v184
    %v194 = vmul.f32 %v96, %v157
    %v195 = vmul.f32 %v97, %v161
    %v196 = vmul.f32 %v98, %v165
    %v197 = vmul.f32 %v99, %v169
    %v198 = vmul.f32 %v100, %v173
    %v199 = vmul.f32 %v101, %v177
    %v200 = vmul.f32 %v102, %v181
    %v201 = vmul.f32 %v103, %v185
    %v202 = vsel %vm55, %v194, 0.0
    %203 = vadd.xlane.f32.xlu0 %v202
    %v204 = vpop.xlane.xlu0 %203
    %v205 = vsel %vm55, %v195, 0.0
    %206 = vadd.xlane.f32.xlu0 %v205
    %v207 = vpop.xlane.xlu0 %206
    %v208 = vsel %vm55, %v196, 0.0
    %209 = vadd.xlane.f32.xlu0 %v208
    %v210 = vpop.xlane.xlu0 %209
    %v211 = vsel %vm55, %v197, 0.0
    %212 = vadd.xlane.f32.xlu0 %v211
    %v213 = vpop.xlane.xlu0 %212
    %v214 = vsel %vm55, %v198, 0.0
    %215 = vadd.xlane.f32.xlu0 %v214
    %v216 = vpop.xlane.xlu0 %215
    %v217 = vsel %vm55, %v199, 0.0
    %218 = vadd.xlane.f32.xlu0 %v217
    %v219 = vpop.xlane.xlu0 %218
    %v220 = vsel %vm55, %v200, 0.0
    %221 = vadd.xlane.f32.xlu0 %v220
    %v222 = vpop.xlane.xlu0 %221
    %v223 = vsel %vm55, %v201, 0.0
    %224 = vadd.xlane.f32.xlu0 %v223
    %v225 = vpop.xlane.xlu0 %224
    %v234 = vlaneseq
    %v235 = vand.u32 %v234, 127
    %v236 = vlaneseq
    %v237 = vshrl.u32 %v236, 7
    %v238 = vsub.s32 %v235, %v237
    %v239 = vrot.slane %v204, %v238
    %v240 = vlaneseq
    %v241 = vshrl.u32 %v240, 7
    %v242 = vsub.s32 %v235, %v241
    %v243 = vrot.slane %v207, %v242
    %v244 = vlaneseq
    %v245 = vshrl.u32 %v244, 7
    %v246 = vsub.s32 %v235, %v245
    %v247 = vrot.slane %v210, %v246
    %v248 = vlaneseq
    %v249 = vshrl.u32 %v248, 7
    %v250 = vsub.s32 %v235, %v249
    %v251 = vrot.slane %v213, %v250
    %v252 = vlaneseq
    %v253 = vshrl.u32 %v252, 7
    %v254 = vsub.s32 %v235, %v253
    %v255 = vrot.slane %v216, %v254
    %v256 = vlaneseq
    %v257 = vshrl.u32 %v256, 7
    %v258 = vsub.s32 %v235, %v257
    %v259 = vrot.slane %v219, %v258
    %v260 = vlaneseq
    %v261 = vshrl.u32 %v260, 7
    %v262 = vsub.s32 %v235, %v261
    %v263 = vrot.slane %v222, %v262
    %v264 = vlaneseq
    %v265 = vshrl.u32 %v264, 7
    %v266 = vsub.s32 %v235, %v265
    %v267 = vrot.slane %v225, %v266
    %vm268 = vcmask 1041409
    %v269 = vsel %vm268, %v243, %v239
    %vm270 = vcmask 1042434
    %v271 = vsel %vm270, %v247, %v269
    %vm272 = vcmask 1043459
    %v273 = vsel %vm272, %v251, %v271
    %vm274 = vcmask 1044484
    %v275 = vsel %vm274, %v255, %v273
    %vm276 = vcmask 1045509
    %v277 = vsel %vm276, %v259, %v275
    %vm278 = vcmask 1046534
    %v279 = vsel %vm278, %v263, %v277
    %vm280 = vcmask 1047559
    %v281 = vsel %vm280, %v267, %v279
    %vm283 = vcmask 31744
    %284 = vst.msk [vmem:[%s3] sm:$0xff] %vm283, %v281
    %vm285 = vcmp.gt.f32.partialorder %v40, 0.0
    %v286 = vsub.f32 0.0, %v204
    %v287 = vsub.f32 0.0, %v207
    %v288 = vsub.f32 0.0, %v210
    %v289 = vsub.f32 0.0, %v213
    %v290 = vsub.f32 0.0, %v216
    %v291 = vsub.f32 0.0, %v219
    %v292 = vsub.f32 0.0, %v222
    %v293 = vsub.f32 0.0, %v225
    %v302 = vlaneseq
    %v303 = vshrl.u32 %v302, 7
    %v304 = vsub.s32 %v235, %v303
    %v305 = vrot.slane %v286, %v304
    %v306 = vlaneseq
    %v307 = vshrl.u32 %v306, 7
    %v308 = vsub.s32 %v235, %v307
    %v309 = vrot.slane %v287, %v308
    %v310 = vlaneseq
    %v311 = vshrl.u32 %v310, 7
    %v312 = vsub.s32 %v235, %v311
    %v313 = vrot.slane %v288, %v312
    %v314 = vlaneseq
    %v315 = vshrl.u32 %v314, 7
    %v316 = vsub.s32 %v235, %v315
    %v317 = vrot.slane %v289, %v316
    %v318 = vlaneseq
    %v319 = vshrl.u32 %v318, 7
    %v320 = vsub.s32 %v235, %v319
    %v321 = vrot.slane %v290, %v320
    %v322 = vlaneseq
    %v323 = vshrl.u32 %v322, 7
    %v324 = vsub.s32 %v235, %v323
    %v325 = vrot.slane %v291, %v324
    %v326 = vlaneseq
    %v327 = vshrl.u32 %v326, 7
    %v328 = vsub.s32 %v235, %v327
    %v329 = vrot.slane %v292, %v328
    %v330 = vlaneseq
    %v331 = vshrl.u32 %v330, 7
    %v332 = vsub.s32 %v235, %v331
    %v333 = vrot.slane %v293, %v332
    %v334 = vsel %vm268, %v309, %v305
    %v335 = vsel %vm270, %v313, %v334
    %v336 = vsel %vm272, %v317, %v335
    %v337 = vsel %vm274, %v321, %v336
    %v338 = vsel %vm276, %v325, %v337
    %v339 = vsel %vm278, %v329, %v338
    %v340 = vsel %vm280, %v333, %v339
    %v342 = vsel %vm285, %v340, %v281
    %v343 = vmax.f32 %v342, 0.0
    %v344 = vsub.f32 0.0, %v342
    %vm345 = vcmp.ne.f32.partialorder %v344, %v344
    %v346 = vadd.f32 %v342, 0.0
    %v347 = vand.u32 2147483647, %v344
    %v348 = vsub.f32 0.0, %v347
    %v349 = vmul.f32 %v348, 1.442695
    %v350 = vpow.pop %v349
    %v351 = vadd.f32 %v350, 1.0
    %v352 = vlog2.pop %v351
    %v353 = vmul.f32 %v352, 0.6931472
    %v354 = vmul.f32 -0.5, %v350
    %v355 = vadd.f32 %v354, 1.0
    %v356 = vmul.f32 %v355, %v350
    %v357 = vand.u32 2147483647, %v350
    %vm358 = vcmp.lt.f32.partialorder %v357, 0.0004427343
    %v359 = vsel %vm358, %v356, %v353
    %v360 = vadd.f32 %v343, %v359
    %v361 = vsel %vm345, %v346, %v360
    %v362 = vsel %vm283, %v361, 0.0
    %363 = vadd.xlane.f32.xlu0 %v362
    %v364 = vpop.xlane.xlu0 %363
    %v365 = vrot.slane %v364, 4
    %v366 = vadd.f32 %v364, %v365
    %v367 = vrot.slane %v366, 2
    %v368 = vadd.f32 %v366, %v367
    %v369 = vrot.slane %v368, 1
    %v370 = vadd.f32 %v368, %v369
    %s371 = vtos %v370
    %v372 = vstv %s371
    %vm373 = vcmask 0
    %374 = vst.msk [vmem:[#allocation5] sm:$0x1] %vm373, %v372
    // Predicated region
    $region18: #{tpu_custom_call.1} parent=1 // pred_check
      _
    $region19: #{tpu_custom_call.1} parent=1 // pred_check_branch
      %376 = sbr.rel (0) target = $region21
    $region20: #{tpu_custom_call.1} parent=1 // pred_region
      _
    $region21: #{tpu_custom_call.1} parent=1 // pred_fallthru
      _
    // Predicated region
    $region22: #{tpu_custom_call.1} parent=1 // pred_check
      _
    $region23: #{tpu_custom_call.1} parent=1 // pred_check_branch
      %378 = sbr.rel (0) target = $region25
    $region24: #{tpu_custom_call.1} parent=1 // pred_region
      %s380 = ssub.s32 16, 16
      %381 = vsyncadd [#allocation4], %s380
      %s383 = sshll.u32 [#allocation5], 4
      %s384 = int_to_ptr.vmem [resolvable:$true] %s383
      %386 = dma.vmem_to_hbm [thread:$0]  %s384, 16, %s4, [#allocation4]
    $region25: #{tpu_custom_call.1} parent=1 // pred_fallthru
      _
    // Predicated region
    $region26: #{tpu_custom_call.1} parent=1 // pred_check
      _
    $region27: #{tpu_custom_call.1} parent=1 // pred_check_branch
      %388 = sbr.rel (0) target = $region29
    $region28: #{tpu_custom_call.1} parent=1 // pred_region
      _
    $region29: #{tpu_custom_call.1} parent=1 // pred_fallthru
      _
    // Predicated region
    $region30: #{tpu_custom_call.1} parent=1 // pred_check
      _
    $region31: #{tpu_custom_call.1} parent=1 // pred_check_branch
      %390 = sbr.rel (0) target = $region33
    $region32: #{tpu_custom_call.1} parent=1 // pred_region
      %391 = dma.done [#allocation4], 16
    $region33: #{tpu_custom_call.1} parent=1 // pred_fallthru
      _
    %392 = vsyncpa [#allocation3], 1
    %393 = vsyncpa [#allocation4], 1

</llo_original>
